<compile_context>
chip_gen: v5e
topology: v5e:2x2
jax: 0.10.0
libtpu: 0.0.40
codegen_flags: <defaults>
</compile_context>

<pallas_src>
import functools
import math

import numpy as np
import jax
import jax.numpy as jnp
from jax.experimental import pallas as pl
from jax.experimental.pallas import tpu as pltpu
from jax.scipy.linalg import block_diag

NEG_SLOPE = 0.01  # nn.LeakyReLU() default negative_slope


def _leaky(x):
    return jnp.where(x > 0, x, NEG_SLOPE * x)


def _mm(a, b):
    # Default precision matches the pure-JAX reference lowering on TPU.
    return jnp.dot(a, b, preferred_element_type=jnp.float32)


def _generator_onet_kernel(xb_ref, xt_ref, xl_ref, wa_ref, wb_ref, out_ref, *, lay):
    HID, bi, lat, v0 = lay['HID'], lay['bi'], lay['lat'], lay['vrow0']

    xb = xb_ref[...]            # (B, branch_in)
    xt = xt_ref[...]            # (B, 1)
    xl = xl_ref[...]            # (B, latent)

    def mat(off, r, c):         # static slice of the matrix slab (zero cost)
        return wa_ref[off:off + r, :c]

    def vec(i, c):              # static single-row slice of the vector region
        return wb_ref[v0 + i:v0 + i + 1, :c]

    fw0a = mat(lay['r_fw0a'], bi, HID)       # (branch_in, 4H)
    fw0b = mat(lay['r_fw0b'], lat, HID)      # (latent, 4H)
    fw1  = mat(lay['r_fw1'], HID, HID)       # block-diag (4H, 4H)
    fw2  = mat(lay['r_fw2'], HID, HID)
    tw1  = mat(lay['r_tw1'], 128, 128)       # trunk block-diag, zero-padded to 128
    tw2  = mat(lay['r_tw2'], 128, 128)
    w_heads = wb_ref[:HID, :]                # (4H, 512) merged output heads

    fw0c = vec(0, HID); fb0 = vec(1, HID); fb1 = vec(2, HID); fb2 = vec(3, HID)
    res_mask = vec(4, HID)
    tb1 = vec(5, 128); tb2 = vec(6, 128)
    b_heads = vec(7, 512)

    # ---- fused (shift | scale | branch | bias) hidden path -------------------
    h0 = _leaky(_mm(xb, fw0a) + _mm(xl, fw0b) + xt * fw0c + fb0)
    h = _leaky(_mm(h0, fw1) + fb1)
    h = _leaky(_mm(h, fw2) + fb2)
    h = h + res_mask * h0                    # residual only on the 3 BranchNets

    # ---- single merged head matmul: scale' | shift' | branch*Wout/sqrtK | scalar
    heads = _mm(h, w_heads) + b_heads        # (B, 512)
    sc  = heads[:, 0:128]                    # folded scale head (trunk layer-0 weight)
    sh  = heads[:, 128:256]                  # folded shift head (+ trunk layer-0 bias)
    xbt = heads[:, 256:384]                  # branch_out repeated * W_out * 1/sqrt(K)
    sct = heads[:, 384:512]                  # lane 0 = branch_out@tbo/sqrt(K) + x_bias

    # ---- wide-lane trunk net (K*H padded to 128 lanes), layer-0 pre-folded ---
    ht = _leaky(xt * sc + sh)
    ht = _leaky(_mm(ht, tw1) + tb1)
    ht = _leaky(_mm(ht, tw2) + tb2)

    out = jnp.sum(ht * xbt + sct, axis=1, keepdims=True)
    out_ref[...] = out.astype(out_ref.dtype)


def generator_onet_forward(x_branch, x_trunk, x_latent, prepared):
    """Bare pallas_call; all packing already done in prepare_params()."""
    (slab_a, slab_b), lay = prepared
    B = x_branch.shape[0]
    kernel = functools.partial(_generator_onet_kernel, lay=lay)
    return pl.pallas_call(
        kernel,
        out_shape=jax.ShapeDtypeStruct((B, 1), jnp.float32),
        in_specs=[pl.BlockSpec(memory_space=pltpu.MemorySpace.VMEM)] * 5,
        out_specs=pl.BlockSpec(memory_space=pltpu.MemorySpace.VMEM),
    )(x_branch, x_trunk, x_latent, slab_a, slab_b)


# ------------------------- one-time parameter packing -------------------------

def _rpad8(n):
    return -(-n // 8) * 8


def prepare_params(raw, *, branch_input_size, trunk_input_size, latent_dim,
                   hidden, num_basis):
    """Pack raw per-net nn.Linear params (W as (in,out), b as (1,out)) into two
    pre-padded VMEM slabs + a static layout dict.  Call once and reuse."""
    H, K = hidden, num_basis
    HID = 4 * H            # shift | scale | branch | bias hidden blocks
    KH = K * H
    bi = branch_input_size
    f32 = jnp.float32
    # TODO(synk): generalize the 128-lane padding if K*H or 4*H ever exceed 128.
    assert HID <= 128 and KH <= 128, "packing assumes K*H <= 128 and 4*H <= 128"

    nets = [raw['shift'], raw['scale'], raw['branch']]
    bw0, bb0, bw1, bb1, bw2, bb2, bwo, bbo = raw['bias']

    # --- fused first layer (cat(x_branch, x_latent) split + x_trunk row) ---
    fw0a = jnp.concatenate([p[0][:bi] for p in nets]
                           + [jnp.zeros((bi, H), f32)], axis=1)          # (bi, 4H)
    fw0b = jnp.concatenate([p[0][bi:] for p in nets]
                           + [bw0[trunk_input_size:]], axis=1)           # (lat, 4H)
    fw0c = jnp.concatenate([jnp.zeros((1, 3 * H), f32),
                            bw0[:trunk_input_size]], axis=1)             # (1, 4H)
    fb0 = jnp.concatenate([p[1] for p in nets] + [bb0], axis=1)
    fw1 = block_diag(*([p[2] for p in nets] + [bw1]))                    # (4H, 4H)
    fb1 = jnp.concatenate([p[3] for p in nets] + [bb1], axis=1)
    fw2 = block_diag(*([p[4] for p in nets] + [bw2]))
    fb2 = jnp.concatenate([p[5] for p in nets] + [bb2], axis=1)
    res_mask = jnp.concatenate([jnp.ones((1, 3 * H), f32),
                                jnp.zeros((1, H), f32)], axis=1)

    def pad_head(w, blk):   # embed an (H, out) head weight into the 4H hidden space
        return jnp.pad(w, ((blk * H, (3 - blk) * H), (0, 0)))

    wshift, bshift = pad_head(nets[0][6], 0), nets[0][7]
    wscale, bscale = pad_head(nets[1][6], 1), nets[1][7]
    wbr,    bbr    = pad_head(nets[2][6], 2), nets[2][7]
    wbias,  bbias  = pad_head(bwo, 3), bbo                               # (4H,1),(1,1)

    # --- trunk net algebraic folding ---
    tw0, tb0, tw1, tb1, tw2, tb2, two, tbo = raw['trunk']
    erep = jnp.repeat(jnp.eye(K, dtype=f32), H, axis=1)                  # (K, K*H)
    tw0_t = jnp.tile(tw0.reshape(1, H), (1, K))                          # (1, K*H)
    tb0_t = jnp.tile(tb0, (1, K))
    two_flat = two.T.reshape(1, KH)                                      # lane kH+j -> two[j,k]
    inv_sqrt_k = 1.0 / math.sqrt(K)

    w_sc = (wscale @ erep) * tw0_t                                       # (4H, K*H)
    b_sc = (bscale @ erep) * tw0_t
    w_sh = (wshift @ erep) * tw0_t
    b_sh = (bshift @ erep) * tw0_t + tb0_t
    w_xb = (wbr @ erep) * two_flat * inv_sqrt_k
    b_xb = (bbr @ erep) * two_flat * inv_sqrt_k
    w_sca = inv_sqrt_k * (wbr @ tbo.T) + wbias                           # (4H, 1)
    b_sca = inv_sqrt_k * (bbr @ tbo.T) + bbias                           # (1, 1)

    def lane_pad(x, width):
        return jnp.pad(x, ((0, 0), (0, width - x.shape[1])))

    w_heads = jnp.concatenate([lane_pad(w_sc, 128), lane_pad(w_sh, 128),
                               lane_pad(w_xb, 128), lane_pad(w_sca, 128)], axis=1)
    b_heads = jnp.concatenate([lane_pad(b_sc, 128), lane_pad(b_sh, 128),
                               lane_pad(b_xb, 128), lane_pad(b_sca, 128)], axis=1)

    tw1_p = jnp.pad(block_diag(*([tw1] * K)), ((0, 128 - KH), (0, 128 - KH)))
    tw2_p = jnp.pad(block_diag(*([tw2] * K)), ((0, 128 - KH), (0, 128 - KH)))
    tb1_p = lane_pad(jnp.tile(tb1, (1, K)), 128)
    tb2_p = lane_pad(jnp.tile(tb2, (1, K)), 128)

    # --- slab A: all matrices, padded to 128 cols, 8-aligned row offsets ---
    mats = [fw0a, fw0b, fw1, fw2, tw1_p, tw2_p]
    offs, rows = [], 0
    for m in mats:
        offs.append(rows)
        rows += _rpad8(m.shape[0])
    slab_a = jnp.zeros((rows, 128), f32)
    for m, off in zip(mats, offs):
        slab_a = slab_a.at[off:off + m.shape[0], :m.shape[1]].set(m)

    # --- slab B: merged head weight (rows 0:4H) + all (1,N) row vectors ---
    vecs = [fw0c, fb0, fb1, fb2, res_mask, tb1_p, tb2_p, b_heads]
    vrow0 = _rpad8(HID)
    slab_b = jnp.zeros((vrow0 + _rpad8(len(vecs)), 512), f32)
    slab_b = slab_b.at[:HID, :w_heads.shape[1]].set(w_heads)
    for i, v in enumerate(vecs):
        slab_b = slab_b.at[vrow0 + i, :v.shape[1]].set(v[0])

    lay = dict(H=H, K=K, HID=HID, KH=KH, bi=bi, lat=latent_dim,
               r_fw0a=offs[0], r_fw0b=offs[1], r_fw1=offs[2], r_fw2=offs[3],
               r_tw1=offs[4], r_tw2=offs[5], vrow0=vrow0)
    return (slab_a, slab_b), lay


# ----------------------- parameter init & pure-JAX reference ------------------

def _init_linear(key, in_dim, out_dim):
    kw, kb = jax.random.split(key)
    bound = 1.0 / np.sqrt(in_dim)
    w = jax.random.uniform(kw, (in_dim, out_dim), jnp.float32, -bound, bound)
    b = jax.random.uniform(kb, (1, out_dim), jnp.float32, -bound, bound)
    return w, b


def init_params(key, branch_input_size, trunk_input_size, latent_dim, hidden, num_basis):
    keys = iter(jax.random.split(key, 20))

    def lin(i, o):
        return _init_linear(next(keys), i, o)

    b_in = branch_input_size + latent_dim
    bias_in = trunk_input_size + latent_dim

    def branch_like():
        return [*lin(b_in, hidden), *lin(hidden, hidden),
                *lin(hidden, hidden), *lin(hidden, num_basis)]

    return {
        'shift': branch_like(),
        'scale': branch_like(),
        'branch': branch_like(),
        'bias': [*lin(bias_in, hidden), *lin(hidden, hidden),
                 *lin(hidden, hidden), *lin(hidden, trunk_input_size)],
        'trunk': [*lin(trunk_input_size, hidden), *lin(hidden, hidden),
                  *lin(hidden, hidden), *lin(hidden, num_basis)],
    }


def reference_forward(x_branch, x_trunk, x_latent, raw, num_basis):
    def leaky(x):
        return jnp.where(x > 0, x, NEG_SLOPE * x)

    def branchnet(x, p):
        w0, b0, w1, b1, w2, b2, wo, bo = p
        x = leaky(x @ w0 + b0)
        x_in = x
        x = leaky(x @ w1 + b1)
        x = leaky(x @ w2 + b2)
        x = x + x_in
        return x @ wo + bo

    def neuralnet(x, p):
        w0, b0, w1, b1, w2, b2, wo, bo = p
        x = leaky(x @ w0 + b0)
        x = leaky(x @ w1 + b1)
        x = leaky(x @ w2 + b2)
        return x @ wo + bo

    bl = jnp.concatenate([x_branch, x_latent], axis=1)
    tl = jnp.concatenate([x_trunk, x_latent], axis=1)
    x_shift = branchnet(bl, raw['shift'])
    x_scale = branchnet(bl, raw['scale'])
    x_bias = neuralnet(tl, raw['bias'])
    xb_out = branchnet(bl, raw['branch'])

    B = x_branch.shape[0]
    t = (x_trunk * x_scale + x_shift).reshape(B * num_basis, 1)
    tw0, tb0, tw1, tb1, tw2, tb2, two, tbo = raw['trunk']
    h = leaky(t @ tw0 + tb0)
    h = leaky(h @ tw1 + tb1)
    h = leaky(h @ tw2 + tb2)
    out_full = (h @ two + tbo).reshape(B, num_basis, num_basis)
    trunk_diag = jnp.diagonal(out_full, axis1=-2, axis2=-1)
    return (jnp.sum(xb_out * trunk_diag, axis=1, keepdims=True)
            / jnp.sqrt(jnp.float32(num_basis)) + x_bias)


if __name__ == "__main__":
    B = 4
    BRANCH_IN = 100   # branch_input_size
    TRUNK_IN = 1      # trunk_input_size
    LATENT = 10       # latent_dim
    HIDDEN = 8        # hidden_neurons = [8, 8, 8]
    NUM_BASIS = 10    # num_basis_functions

    key = jax.random.PRNGKey(0)
    k_xb, k_xt, k_xl, k_p = jax.random.split(key, 4)
    x_branch = jax.random.normal(k_xb, (B, BRANCH_IN), jnp.float32)
    x_trunk = jax.random.normal(k_xt, (B, TRUNK_IN), jnp.float32)
    x_latent = jax.random.normal(k_xl, (B, LATENT), jnp.float32)

    raw = init_params(k_p, BRANCH_IN, TRUNK_IN, LATENT, HIDDEN, NUM_BASIS)
    prepared_slabs, lay = prepare_params(
        raw, branch_input_size=BRANCH_IN, trunk_input_size=TRUNK_IN,
        latent_dim=LATENT, hidden=HIDDEN, num_basis=NUM_BASIS)
    prepared_slabs = jax.block_until_ready(prepared_slabs)   # one-time packing
    prepared = (prepared_slabs, lay)

    out = generator_onet_forward(x_branch, x_trunk, x_latent, prepared)
    out = jax.block_until_ready(out)
    assert out.shape == (B, 1), out.shape

    ref = jax.block_until_ready(
        reference_forward(x_branch, x_trunk, x_latent, raw, NUM_BASIS))
    np.testing.assert_allclose(np.asarray(out), np.asarray(ref), rtol=1e-4, atol=1e-4)

    print("KERNEL_OK")
</pallas_src>

<mosaic_0001>
module attributes {stable_mosaic.version = 11 : i64} {
  func.func @_generator_onet_kernel(%arg0: memref<4x100xf32, #tpu.memory_space<vmem>>, %arg1: memref<4x1xf32, #tpu.memory_space<vmem>>, %arg2: memref<4x10xf32, #tpu.memory_space<vmem>>, %arg3: memref<440x128xf32, #tpu.memory_space<vmem>>, %arg4: memref<40x512xf32, #tpu.memory_space<vmem>>, %arg5: memref<4x1xf32, #tpu.memory_space<vmem>>) attributes {dimension_semantics = [], scalar_prefetch = 0 : i64, scratch_operands = 0 : i64, tpu.core_type = #tpu.core_type<tc>} {
    %c0 = arith.constant 0 : index
    %c0_0 = arith.constant 0 : index
    %0 = vector.load %arg0[%c0, %c0_0] : memref<4x100xf32, #tpu.memory_space<vmem>>, vector<4x100xf32>
    %c0_1 = arith.constant 0 : index
    %c0_2 = arith.constant 0 : index
    %1 = vector.load %arg1[%c0_1, %c0_2] : memref<4x1xf32, #tpu.memory_space<vmem>>, vector<4x1xf32>
    %c0_3 = arith.constant 0 : index
    %c0_4 = arith.constant 0 : index
    %2 = vector.load %arg2[%c0_3, %c0_4] : memref<4x10xf32, #tpu.memory_space<vmem>>, vector<4x10xf32>
    %c0_5 = arith.constant 0 : index
    %c0_6 = arith.constant 0 : index
    %3 = vector.load %arg3[%c0_5, %c0_6] : memref<440x128xf32, #tpu.memory_space<vmem>>, vector<100x32xf32>
    %c104 = arith.constant 104 : index
    %c0_7 = arith.constant 0 : index
    %4 = vector.load %arg3[%c104, %c0_7] : memref<440x128xf32, #tpu.memory_space<vmem>>, vector<10x32xf32>
    %c120 = arith.constant 120 : index
    %c0_8 = arith.constant 0 : index
    %5 = vector.load %arg3[%c120, %c0_8] : memref<440x128xf32, #tpu.memory_space<vmem>>, vector<32x32xf32>
    %c152 = arith.constant 152 : index
    %c0_9 = arith.constant 0 : index
    %6 = vector.load %arg3[%c152, %c0_9] : memref<440x128xf32, #tpu.memory_space<vmem>>, vector<32x32xf32>
    %c184 = arith.constant 184 : index
    %c0_10 = arith.constant 0 : index
    %7 = vector.load %arg3[%c184, %c0_10] : memref<440x128xf32, #tpu.memory_space<vmem>>, vector<128x128xf32>
    %c312 = arith.constant 312 : index
    %c0_11 = arith.constant 0 : index
    %8 = vector.load %arg3[%c312, %c0_11] : memref<440x128xf32, #tpu.memory_space<vmem>>, vector<128x128xf32>
    %c0_12 = arith.constant 0 : index
    %c0_13 = arith.constant 0 : index
    %9 = vector.load %arg4[%c0_12, %c0_13] : memref<40x512xf32, #tpu.memory_space<vmem>>, vector<32x512xf32>
    %c32 = arith.constant 32 : index
    %c0_14 = arith.constant 0 : index
    %10 = vector.load %arg4[%c32, %c0_14] : memref<40x512xf32, #tpu.memory_space<vmem>>, vector<1x32xf32>
    %c33 = arith.constant 33 : index
    %c0_15 = arith.constant 0 : index
    %11 = vector.load %arg4[%c33, %c0_15] : memref<40x512xf32, #tpu.memory_space<vmem>>, vector<1x32xf32>
    %c34 = arith.constant 34 : index
    %c0_16 = arith.constant 0 : index
    %12 = vector.load %arg4[%c34, %c0_16] : memref<40x512xf32, #tpu.memory_space<vmem>>, vector<1x32xf32>
    %c35 = arith.constant 35 : index
    %c0_17 = arith.constant 0 : index
    %13 = vector.load %arg4[%c35, %c0_17] : memref<40x512xf32, #tpu.memory_space<vmem>>, vector<1x32xf32>
    %c36 = arith.constant 36 : index
    %c0_18 = arith.constant 0 : index
    %14 = vector.load %arg4[%c36, %c0_18] : memref<40x512xf32, #tpu.memory_space<vmem>>, vector<1x32xf32>
    %c37 = arith.constant 37 : index
    %c0_19 = arith.constant 0 : index
    %15 = vector.load %arg4[%c37, %c0_19] : memref<40x512xf32, #tpu.memory_space<vmem>>, vector<1x128xf32>
    %c38 = arith.constant 38 : index
    %c0_20 = arith.constant 0 : index
    %16 = vector.load %arg4[%c38, %c0_20] : memref<40x512xf32, #tpu.memory_space<vmem>>, vector<1x128xf32>
    %c39 = arith.constant 39 : index
    %c0_21 = arith.constant 0 : index
    %17 = vector.load %arg4[%c39, %c0_21] : memref<40x512xf32, #tpu.memory_space<vmem>>, vector<1x512xf32>
    %cst = arith.constant dense<0.000000e+00> : vector<4x32xf32>
    %18 = tpu.matmul %0, %3, %cst {dimension_numbers = #tpu.dot_dimension_numbers<[1], [0], [0], [1], [0, 0, 1, 1], [], []>} : vector<4x100xf32>, vector<100x32xf32>, vector<4x32xf32> -> vector<4x32xf32>
    %cst_22 = arith.constant dense<0.000000e+00> : vector<4x32xf32>
    %19 = tpu.matmul %2, %4, %cst_22 {dimension_numbers = #tpu.dot_dimension_numbers<[1], [0], [0], [1], [0, 0, 1, 1], [], []>} : vector<4x10xf32>, vector<10x32xf32>, vector<4x32xf32> -> vector<4x32xf32>
    %20 = arith.addf %18, %19 : vector<4x32xf32>
    %21 = vector.broadcast %1 : vector<4x1xf32> to vector<4x32xf32>
    %22 = vector.broadcast %10 : vector<1x32xf32> to vector<4x32xf32>
    %23 = arith.mulf %21, %22 : vector<4x32xf32>
    %24 = arith.addf %20, %23 : vector<4x32xf32>
    %25 = vector.broadcast %11 : vector<1x32xf32> to vector<4x32xf32>
    %26 = arith.addf %24, %25 : vector<4x32xf32>
    %cst_23 = arith.constant 0.000000e+00 : f32
    %27 = vector.broadcast %cst_23 : f32 to vector<4x32xf32>
    %28 = arith.cmpf ogt, %26, %27 : vector<4x32xf32>
    %cst_24 = arith.constant 0.00999999977 : f32
    %29 = vector.broadcast %cst_24 : f32 to vector<4x32xf32>
    %30 = arith.mulf %29, %26 : vector<4x32xf32>
    %31 = arith.select %28, %26, %30 : vector<4x32xi1>, vector<4x32xf32>
    %cst_25 = arith.constant dense<0.000000e+00> : vector<4x32xf32>
    %32 = tpu.matmul %31, %5, %cst_25 {dimension_numbers = #tpu.dot_dimension_numbers<[1], [0], [0], [1], [0, 0, 1, 1], [], []>} : vector<4x32xf32>, vector<32x32xf32>, vector<4x32xf32> -> vector<4x32xf32>
    %33 = vector.broadcast %12 : vector<1x32xf32> to vector<4x32xf32>
    %34 = arith.addf %32, %33 : vector<4x32xf32>
    %cst_26 = arith.constant 0.000000e+00 : f32
    %35 = vector.broadcast %cst_26 : f32 to vector<4x32xf32>
    %36 = arith.cmpf ogt, %34, %35 : vector<4x32xf32>
    %cst_27 = arith.constant 0.00999999977 : f32
    %37 = vector.broadcast %cst_27 : f32 to vector<4x32xf32>
    %38 = arith.mulf %37, %34 : vector<4x32xf32>
    %39 = arith.select %36, %34, %38 : vector<4x32xi1>, vector<4x32xf32>
    %cst_28 = arith.constant dense<0.000000e+00> : vector<4x32xf32>
    %40 = tpu.matmul %39, %6, %cst_28 {dimension_numbers = #tpu.dot_dimension_numbers<[1], [0], [0], [1], [0, 0, 1, 1], [], []>} : vector<4x32xf32>, vector<32x32xf32>, vector<4x32xf32> -> vector<4x32xf32>
    %41 = vector.broadcast %13 : vector<1x32xf32> to vector<4x32xf32>
    %42 = arith.addf %40, %41 : vector<4x32xf32>
    %cst_29 = arith.constant 0.000000e+00 : f32
    %43 = vector.broadcast %cst_29 : f32 to vector<4x32xf32>
    %44 = arith.cmpf ogt, %42, %43 : vector<4x32xf32>
    %cst_30 = arith.constant 0.00999999977 : f32
    %45 = vector.broadcast %cst_30 : f32 to vector<4x32xf32>
    %46 = arith.mulf %45, %42 : vector<4x32xf32>
    %47 = arith.select %44, %42, %46 : vector<4x32xi1>, vector<4x32xf32>
    %48 = vector.broadcast %14 : vector<1x32xf32> to vector<4x32xf32>
    %49 = arith.mulf %48, %31 : vector<4x32xf32>
    %50 = arith.addf %47, %49 : vector<4x32xf32>
    %cst_31 = arith.constant dense<0.000000e+00> : vector<4x512xf32>
    %51 = tpu.matmul %50, %9, %cst_31 {dimension_numbers = #tpu.dot_dimension_numbers<[1], [0], [0], [1], [0, 0, 1, 1], [], []>} : vector<4x32xf32>, vector<32x512xf32>, vector<4x512xf32> -> vector<4x512xf32>
    %52 = vector.broadcast %17 : vector<1x512xf32> to vector<4x512xf32>
    %53 = arith.addf %51, %52 : vector<4x512xf32>
    %54 = vector.extract_strided_slice %53 {offsets = [0, 0], sizes = [4, 128], strides = [1, 1]} : vector<4x512xf32> to vector<4x128xf32>
    %55 = vector.extract_strided_slice %53 {offsets = [0, 128], sizes = [4, 128], strides = [1, 1]} : vector<4x512xf32> to vector<4x128xf32>
    %56 = vector.extract_strided_slice %53 {offsets = [0, 256], sizes = [4, 128], strides = [1, 1]} : vector<4x512xf32> to vector<4x128xf32>
    %57 = vector.extract_strided_slice %53 {offsets = [0, 384], sizes = [4, 128], strides = [1, 1]} : vector<4x512xf32> to vector<4x128xf32>
    %58 = vector.broadcast %1 : vector<4x1xf32> to vector<4x128xf32>
    %59 = arith.mulf %58, %54 : vector<4x128xf32>
    %60 = arith.addf %59, %55 : vector<4x128xf32>
    %cst_32 = arith.constant 0.000000e+00 : f32
    %61 = vector.broadcast %cst_32 : f32 to vector<4x128xf32>
    %62 = arith.cmpf ogt, %60, %61 : vector<4x128xf32>
    %cst_33 = arith.constant 0.00999999977 : f32
    %63 = vector.broadcast %cst_33 : f32 to vector<4x128xf32>
    %64 = arith.mulf %63, %60 : vector<4x128xf32>
    %65 = arith.select %62, %60, %64 : vector<4x128xi1>, vector<4x128xf32>
    %cst_34 = arith.constant dense<0.000000e+00> : vector<4x128xf32>
    %66 = tpu.matmul %65, %7, %cst_34 {dimension_numbers = #tpu.dot_dimension_numbers<[1], [0], [0], [1], [0, 0, 1, 1], [], []>} : vector<4x128xf32>, vector<128x128xf32>, vector<4x128xf32> -> vector<4x128xf32>
    %67 = vector.broadcast %15 : vector<1x128xf32> to vector<4x128xf32>
    %68 = arith.addf %66, %67 : vector<4x128xf32>
    %cst_35 = arith.constant 0.000000e+00 : f32
    %69 = vector.broadcast %cst_35 : f32 to vector<4x128xf32>
    %70 = arith.cmpf ogt, %68, %69 : vector<4x128xf32>
    %cst_36 = arith.constant 0.00999999977 : f32
    %71 = vector.broadcast %cst_36 : f32 to vector<4x128xf32>
    %72 = arith.mulf %71, %68 : vector<4x128xf32>
    %73 = arith.select %70, %68, %72 : vector<4x128xi1>, vector<4x128xf32>
    %cst_37 = arith.constant dense<0.000000e+00> : vector<4x128xf32>
    %74 = tpu.matmul %73, %8, %cst_37 {dimension_numbers = #tpu.dot_dimension_numbers<[1], [0], [0], [1], [0, 0, 1, 1], [], []>} : vector<4x128xf32>, vector<128x128xf32>, vector<4x128xf32> -> vector<4x128xf32>
    %75 = vector.broadcast %16 : vector<1x128xf32> to vector<4x128xf32>
    %76 = arith.addf %74, %75 : vector<4x128xf32>
    %cst_38 = arith.constant 0.000000e+00 : f32
    %77 = vector.broadcast %cst_38 : f32 to vector<4x128xf32>
    %78 = arith.cmpf ogt, %76, %77 : vector<4x128xf32>
    %cst_39 = arith.constant 0.00999999977 : f32
    %79 = vector.broadcast %cst_39 : f32 to vector<4x128xf32>
    %80 = arith.mulf %79, %76 : vector<4x128xf32>
    %81 = arith.select %78, %76, %80 : vector<4x128xi1>, vector<4x128xf32>
    %82 = arith.mulf %81, %56 : vector<4x128xf32>
    %83 = arith.addf %82, %57 : vector<4x128xf32>
    %cst_40 = arith.constant dense<0.000000e+00> : vector<4xf32>
    %84 = vector.multi_reduction <add>, %83, %cst_40 [1] : vector<4x128xf32> to vector<4xf32>
    %85 = vector.shape_cast %84 : vector<4xf32> to vector<4x1xf32>
    %c0_41 = arith.constant 0 : index
    %c0_42 = arith.constant 0 : index
    %86 = vector.load %arg5[%c0_41, %c0_42] : memref<4x1xf32, #tpu.memory_space<vmem>>, vector<4x1xf32>
    tpu.vector_store %arg5[%c0_41, %c0_42], %85 {strides = array<i32>} : memref<4x1xf32, #tpu.memory_space<vmem>>, vector<4x1xf32>,
    return
  }
}

</mosaic_0001>

<llo_original>
// kernel: tpu_custom_call.1
$region0: #{tpu_custom_call.1}
  #allocation0 [shape = 'u32[]', space=smem, size = 0x4, offset = 0x4, fixed_abs, tag = 'smem constant byte address 0x4 - core index']
  #allocation1 [shape = 'u32[72,128]{1,0:T(1,128)}', space=vmem, size = 0x9000, scoped, tag = 'internal scratch']
  %s0 = inlined_call_operand.vmem [shape: f32[4,100], index: 0, kind: input, shape index: {}]
  %s1 = inlined_call_operand.vmem [shape: f32[4,1], index: 1, kind: input, shape index: {}]
  %s2 = inlined_call_operand.hbm [shape: f32[4,10], index: 2, kind: input, shape index: {}]
  %s3 = inlined_call_operand.hbm [shape: f32[440,128], index: 3, kind: input, shape index: {}]
  %s4 = inlined_call_operand.hbm [shape: f32[40,512], index: 4, kind: input, shape index: {}]
  %s5 = inlined_call_operand.vmem [shape: f32[4,1], index: 5, kind: output, shape index: {}]
  %s6 = sld [smem:[#allocation0]]
  $region42: #{tpu_custom_call.1} parent=0
    _
  %s8 = ssub.s32 1, %s6
  %s9 = scalar_select 0, %s8, %s6
  $region1: #{tpu_custom_call.1} parent=0
    #allocation2 [shape = 'u8[2048]{0}', space=vmem, size = 0x800, scoped, tag = 'input window, operand 2, single buffered']
    #allocation3 [shape = 's32[1]{0}', space=sflag, size = 0x4, scoped, tag = 'scoped memory for tpu_custom_call.1']
    #allocation4 [shape = 'u8[225280]{0}', space=vmem, size = 0x37000, scoped, tag = 'input window, operand 3, single buffered']
    #allocation5 [shape = 's32[1]{0}', space=sflag, size = 0x4, scoped, tag = 'scoped memory for tpu_custom_call.1']
    #allocation6 [shape = 'u8[81920]{0}', space=vmem, size = 0x14000, scoped, tag = 'input window, operand 4, single buffered']
    %10 = vsyncpa [#allocation3], 0
    %11 = vsyncpa [#allocation5], 0
    // Predicated region
    $region2: #{tpu_custom_call.1} parent=1 // pred_check
      _
    $region3: #{tpu_custom_call.1} parent=1 // pred_check_branch
      %13 = sbr.rel (0) target = $region5
    $region4: #{tpu_custom_call.1} parent=1 // pred_region
      _
    $region5: #{tpu_custom_call.1} parent=1 // pred_fallthru
      _
    // Predicated region
    $region6: #{tpu_custom_call.1} parent=1 // pred_check
      _
    $region7: #{tpu_custom_call.1} parent=1 // pred_check_branch
      %15 = sbr.rel (0) target = $region9
    $region8: #{tpu_custom_call.1} parent=1 // pred_region
      _
    $region9: #{tpu_custom_call.1} parent=1 // pred_fallthru
      _
    // Predicated region
    $region10: #{tpu_custom_call.1} parent=1 // pred_check
      _
    $region11: #{tpu_custom_call.1} parent=1 // pred_check_branch
      %17 = sbr.rel (0) target = $region13
    $region12: #{tpu_custom_call.1} parent=1 // pred_region
      %19 = vsyncadd [#allocation3], 0
      %s21 = sshll.u32 %s2, 4
      %s22 = int_to_ptr.hbm [resolvable:$true] %s21
      %s23 = sshll.u32 [#allocation2], 4
      %s24 = int_to_ptr.vmem [resolvable:$true] %s23
      %26 = dma.hbm_to_vmem [thread:$0]  %s22, 64, %s24, [#allocation3]
    $region13: #{tpu_custom_call.1} parent=1 // pred_fallthru
      _
    // Predicated region
    $region14: #{tpu_custom_call.1} parent=1 // pred_check
      _
    $region15: #{tpu_custom_call.1} parent=1 // pred_check_branch
      %28 = sbr.rel (0) target = $region17
    $region16: #{tpu_custom_call.1} parent=1 // pred_region
      %30 = vsyncadd [#allocation5], 0
      %s31 = sshll.u32 %s3, 4
      %s32 = int_to_ptr.hbm [resolvable:$true] %s31
      %s33 = sshll.u32 [#allocation4], 4
      %s34 = int_to_ptr.vmem [resolvable:$true] %s33
      %39 = dma.hbm_to_vmem [thread:$0]  %s32, 7040, %s34, [#allocation5], 128, 128, 8
    $region17: #{tpu_custom_call.1} parent=1 // pred_fallthru
      _
    // Predicated region
    $region18: #{tpu_custom_call.1} parent=1 // pred_check
      _
    $region19: #{tpu_custom_call.1} parent=1 // pred_check_branch
      %41 = sbr.rel (0) target = $region21
    $region20: #{tpu_custom_call.1} parent=1 // pred_region
      %43 = vsyncadd [#allocation5], 0
      %s44 = sshll.u32 %s4, 4
      %s45 = int_to_ptr.hbm [resolvable:$true] %s44
      %s46 = sshll.u32 [#allocation6], 4
      %s47 = int_to_ptr.vmem [resolvable:$true] %s46
      %52 = dma.hbm_to_vmem [thread:$0]  %s45, 2560, %s47, [#allocation5], 512, 512, 32
    $region21: #{tpu_custom_call.1} parent=1 // pred_fallthru
      _
    // Predicated region
    $region22: #{tpu_custom_call.1} parent=1 // pred_check
      _
    $region23: #{tpu_custom_call.1} parent=1 // pred_check_branch
      %54 = sbr.rel (0) target = $region25
    $region24: #{tpu_custom_call.1} parent=1 // pred_region
      %56 = dma.done [#allocation3], 64
    $region25: #{tpu_custom_call.1} parent=1 // pred_fallthru
      _
    // Predicated region
    $region26: #{tpu_custom_call.1} parent=1 // pred_check
      _
    $region27: #{tpu_custom_call.1} parent=1 // pred_check_branch
      %58 = sbr.rel (0) target = $region29
    $region28: #{tpu_custom_call.1} parent=1 // pred_region
      %60 = dma.done [#allocation5], 7040
    $region29: #{tpu_custom_call.1} parent=1 // pred_fallthru
      _
    // Predicated region
    $region30: #{tpu_custom_call.1} parent=1 // pred_check
      _
    $region31: #{tpu_custom_call.1} parent=1 // pred_check_branch
      %62 = sbr.rel (0) target = $region33
    $region32: #{tpu_custom_call.1} parent=1 // pred_region
      %64 = dma.done [#allocation5], 2560
    $region33: #{tpu_custom_call.1} parent=1 // pred_fallthru
      _
    %v65 = vld [vmem:[%s0] sm:$0xf]
    %v66 = vld [vmem:[%s1] sm:$0xf]
    %v67 = vld [vmem:[#allocation2] sm:$0xf]
    %v68 = vld [vmem:[#allocation4] sm:$0xff]
    %v69 = vld [vmem:[#allocation4 + $0x8] sm:$0xff]
    %v70 = vld [vmem:[#allocation4 + $0x10] sm:$0xff]
    %v71 = vld [vmem:[#allocation4 + $0x18] sm:$0xff]
    %v72 = vld [vmem:[#allocation4 + $0x20] sm:$0xff]
    %v73 = vld [vmem:[#allocation4 + $0x28] sm:$0xff]
    %v74 = vld [vmem:[#allocation4 + $0x30] sm:$0xff]
    %v75 = vld [vmem:[#allocation4 + $0x38] sm:$0xff]
    %v76 = vld [vmem:[#allocation4 + $0x40] sm:$0xff]
    %v77 = vld [vmem:[#allocation4 + $0x48] sm:$0xff]
    %v78 = vld [vmem:[#allocation4 + $0x50] sm:$0xff]
    %v79 = vld [vmem:[#allocation4 + $0x58] sm:$0xff]
    %v80 = vld [vmem:[#allocation4 + $0x60] sm:$0xf]
    %v81 = vld [vmem:[#allocation4 + $0x68] sm:$0xff]
    %v82 = vld [vmem:[#allocation4 + $0x70] sm:$0x3]
    %v83 = vld [vmem:[#allocation4 + $0x78] sm:$0xff]
    %v84 = vld [vmem:[#allocation4 + $0x80] sm:$0xff]
    %v85 = vld [vmem:[#allocation4 + $0x88] sm:$0xff]
    %v86 = vld [vmem:[#allocation4 + $0x90] sm:$0xff]
    %v87 = vld [vmem:[#allocation4 + $0x98] sm:$0xff]
    %v88 = vld [vmem:[#allocation4 + $0xa0] sm:$0xff]
    %v89 = vld [vmem:[#allocation4 + $0xa8] sm:$0xff]
    %v90 = vld [vmem:[#allocation4 + $0xb0] sm:$0xff]
    %v91 = vld [vmem:[#allocation4 + $0xb8] sm:$0xff]
    %v92 = vld [vmem:[#allocation4 + $0xc0] sm:$0xff]
    %v93 = vld [vmem:[#allocation4 + $0xc8] sm:$0xff]
    %v94 = vld [vmem:[#allocation4 + $0xd0] sm:$0xff]
    %v95 = vld [vmem:[#allocation4 + $0xd8] sm:$0xff]
    %v96 = vld [vmem:[#allocation4 + $0xe0] sm:$0xff]
    %v97 = vld [vmem:[#allocation4 + $0xe8] sm:$0xff]
    %v98 = vld [vmem:[#allocation4 + $0xf0] sm:$0xff]
    %v99 = vld [vmem:[#allocation4 + $0xf8] sm:$0xff]
    %v100 = vld [vmem:[#allocation4 + $0x100] sm:$0xff]
    %v101 = vld [vmem:[#allocation4 + $0x108] sm:$0xff]
    %v102 = vld [vmem:[#allocation4 + $0x110] sm:$0xff]
    %v103 = vld [vmem:[#allocation4 + $0x118] sm:$0xff]
    %v104 = vld [vmem:[#allocation4 + $0x120] sm:$0xff]
    %v105 = vld [vmem:[#allocation4 + $0x128] sm:$0xff]
    %v106 = vld [vmem:[#allocation4 + $0x130] sm:$0xff]
    %v107 = vld [vmem:[#allocation4 + $0x138] sm:$0xff]
    %v108 = vld [vmem:[#allocation4 + $0x140] sm:$0xff]
    %v109 = vld [vmem:[#allocation4 + $0x148] sm:$0xff]
    %v110 = vld [vmem:[#allocation4 + $0x150] sm:$0xff]
    %v111 = vld [vmem:[#allocation4 + $0x158] sm:$0xff]
    %v112 = vld [vmem:[#allocation4 + $0x160] sm:$0xff]
    %v113 = vld [vmem:[#allocation4 + $0x168] sm:$0xff]
    %v114 = vld [vmem:[#allocation4 + $0x170] sm:$0xff]
    %v115 = vld [vmem:[#allocation4 + $0x178] sm:$0xff]
    %v116 = vld [vmem:[#allocation4 + $0x180] sm:$0xff]
    %v117 = vld [vmem:[#allocation4 + $0x188] sm:$0xff]
    %v118 = vld [vmem:[#allocation4 + $0x190] sm:$0xff]
    %v119 = vld [vmem:[#allocation4 + $0x198] sm:$0xff]
    %v120 = vld [vmem:[#allocation4 + $0x1a0] sm:$0xff]
    %v121 = vld [vmem:[#allocation4 + $0x1a8] sm:$0xff]
    %v122 = vld [vmem:[#allocation4 + $0x1b0] sm:$0xff]
    %v123 = vld [vmem:[#allocation6] sm:$0xff]
    %v124 = vld [vmem:[#allocation6 + $0x8] sm:$0xff]
    %v125 = vld [vmem:[#allocation6 + $0x10] sm:$0xff]
    %v126 = vld [vmem:[#allocation6 + $0x18] sm:$0xff]
    %v127 = vld [vmem:[#allocation6 + $0x20] sm:$0xff]
    %v128 = vld [vmem:[#allocation6 + $0x28] sm:$0xff]
    %v129 = vld [vmem:[#allocation6 + $0x30] sm:$0xff]
    %v130 = vld [vmem:[#allocation6 + $0x38] sm:$0xff]
    %v131 = vld [vmem:[#allocation6 + $0x40] sm:$0xff]
    %v132 = vld [vmem:[#allocation6 + $0x48] sm:$0xff]
    %v133 = vld [vmem:[#allocation6 + $0x50] sm:$0xff]
    %v134 = vld [vmem:[#allocation6 + $0x58] sm:$0xff]
    %v135 = vld [vmem:[#allocation6 + $0x60] sm:$0xff]
    %v136 = vld [vmem:[#allocation6 + $0x68] sm:$0xff]
    %v137 = vld [vmem:[#allocation6 + $0x70] sm:$0xff]
    %v138 = vld [vmem:[#allocation6 + $0x78] sm:$0xff]
    %v139 = vld [vmem:[#allocation6 + $0x80] ss:$0 sm:$0xff]
    %v140 = vld [vmem:[#allocation6 + $0x81] ss:$0 sm:$0xff]
    %v141 = vld [vmem:[#allocation6 + $0x82] ss:$0 sm:$0xff]
    %v142 = vld [vmem:[#allocation6 + $0x83] ss:$0 sm:$0xff]
    %v143 = vld [vmem:[#allocation6 + $0x84] ss:$0 sm:$0xff]
    %v144 = vld [vmem:[#allocation6 + $0x85] ss:$0 sm:$0xff]
    %v145 = vld [vmem:[#allocation6 + $0x86] ss:$0 sm:$0xff]
    %s146 = scalar_lea.vmem [#allocation6], 135
    %v147 = vld [vmem:[%s146] ss:$8 sm:$0xf]
    %vm148 = vcmask 80896
    %v150 = vsel %vm148, %v67, 0
    %vm152 = vcmask 1041408
    %v154 = vsel %vm152, %v82, 0
    %156 = vmatpush.msra.mxu0 0.0
    %157 = vmatpush.msra.mxu0 0.0
    %158 = vmatpush.msra.mxu0 0.0
    %159 = vmatpush.msra.mxu0 0.0
    %160 = vmatpush.msra.mxu0 0.0
    %161 = vmatpush.msra.mxu0 0.0
    %162 = vmatpush.msra.mxu0 0.0
    %163 = vmatpush.msra.mxu0 0.0
    %164 = vmatpush.msra.mxu0 0.0
    %165 = vmatpush.msra.mxu0 0.0
    %166 = vmatpush.msra.mxu0 0.0
    %167 = vmatpush.msra.mxu0 0.0
    %168 = vmatpush.msra.mxu0 0.0
    %169 = vmatpush.msra.mxu0 0.0
    %170 = vmatpush.msra.mxu0 %v154
    %171 = vmatpush.msra.mxu0 %v81
    %172 = vmatmul.f32.gmra.mxu0 %v150
    %v173 = vpop.f32.mrf.mxu0
    %v174 = vadd.f32 0.0, %v173
    %175 = vdwg.mxu0
    %vm176 = vcmask 818176
    %v178 = vsel %vm176, %v65, 0
    %vm180 = vcmask 1043456
    %v182 = vsel %vm180, %v80, 0
    %184 = vmatpush.msra.mxu0 0.0
    %185 = vmatpush.msra.mxu0 0.0
    %186 = vmatpush.msra.mxu0 0.0
    %187 = vmatpush.msra.mxu0 %v182
    %188 = vmatpush.msra.mxu0 %v79
    %189 = vmatpush.msra.mxu0 %v78
    %190 = vmatpush.msra.mxu0 %v77
    %191 = vmatpush.msra.mxu0 %v76
    %192 = vmatpush.msra.mxu0 %v75
    %193 = vmatpush.msra.mxu0 %v74
    %194 = vmatpush.msra.mxu0 %v73
    %195 = vmatpush.msra.mxu0 %v72
    %196 = vmatpush.msra.mxu0 %v71
    %197 = vmatpush.msra.mxu0 %v70
    %198 = vmatpush.msra.mxu0 %v69
    %199 = vmatpush.msra.mxu0 %v68
    %200 = vmatmul.f32.gmra.mxu0 %v178
    %v201 = vpop.f32.mrf.mxu0
    %v202 = vadd.f32 %v174, %v201
    %203 = vdwg.mxu0
    %205 = vset.pattern.permute.xlu0 0
    %206 = vperm.xlu0 %205, %v66
    %v207 = vpop.permute.xlu0 %206
    %v209 = vmul.f32 %v207, %v139
    %v210 = vadd.f32 %v202, %v209
    %v211 = vadd.f32 %v210, %v140
    %vm212 = vcmp.gt.f32.partialorder %v211, 0.0
    %v213 = vmul.f32 %v211, 0.01
    %v214 = vsel %vm212, %v211, %v213
    %vm215 = vcmask 261120
    %v217 = vsel %vm215, %v214, 0
    %219 = vmatpush.msra.mxu0 0.0
    %220 = vmatpush.msra.mxu0 0.0
    %221 = vmatpush.msra.mxu0 0.0
    %222 = vmatpush.msra.mxu0 0.0
    %223 = vmatpush.msra.mxu0 0.0
    %224 = vmatpush.msra.mxu0 0.0
    %225 = vmatpush.msra.mxu0 0.0
    %226 = vmatpush.msra.mxu0 0.0
    %227 = vmatpush.msra.mxu0 0.0
    %228 = vmatpush.msra.mxu0 0.0
    %229 = vmatpush.msra.mxu0 0.0
    %230 = vmatpush.msra.mxu0 0.0
    %231 = vmatpush.msra.mxu0 %v86
    %232 = vmatpush.msra.mxu0 %v85
    %233 = vmatpush.msra.mxu0 %v84
    %234 = vmatpush.msra.mxu0 %v83
    %235 = vmatmul.f32.gmra.mxu0 %v217
    %v236 = vpop.f32.mrf.mxu0
    %v237 = vadd.f32 %v141, %v236
    %238 = vdwg.mxu0
    %vm239 = vcmp.gt.f32.partialorder %v237, 0.0
    %v240 = vmul.f32 %v237, 0.01
    %v241 = vsel %vm239, %v237, %v240
    %v243 = vsel %vm215, %v241, 0
    %245 = vmatpush.msra.mxu0 0.0
    %246 = vmatpush.msra.mxu0 0.0
    %247 = vmatpush.msra.mxu0 0.0
    %248 = vmatpush.msra.mxu0 0.0
    %249 = vmatpush.msra.mxu0 0.0
    %250 = vmatpush.msra.mxu0 0.0
    %251 = vmatpush.msra.mxu0 0.0
    %252 = vmatpush.msra.mxu0 0.0
    %253 = vmatpush.msra.mxu0 0.0
    %254 = vmatpush.msra.mxu0 0.0
    %255 = vmatpush.msra.mxu0 0.0
    %256 = vmatpush.msra.mxu0 0.0
    %257 = vmatpush.msra.mxu0 %v90
    %258 = vmatpush.msra.mxu0 %v89
    %259 = vmatpush.msra.mxu0 %v88
    %260 = vmatpush.msra.mxu0 %v87
    %261 = vmatmul.f32.gmra.mxu0 %v243
    %v262 = vpop.f32.mrf.mxu0
    %v263 = vadd.f32 %v142, %v262
    %264 = vdwg.mxu0
    %vm265 = vcmp.gt.f32.partialorder %v263, 0.0
    %v266 = vmul.f32 %v263, 0.01
    %v267 = vsel %vm265, %v263, %v266
    %v268 = vmul.f32 %v143, %v214
    %v269 = vadd.f32 %v267, %v268
    %v271 = vperm.slane %v147, 0
    %v272 = vperm.slane %v147, 1
    %v273 = vperm.slane %v147, 2
    %v274 = vperm.slane %v147, 3
    %v280 = vsel %vm215, %v269, 0
    %282 = vmatpush.msra.mxu0 0.0
    %283 = vmatpush.msra.mxu0 0.0
    %284 = vmatpush.msra.mxu0 0.0
    %285 = vmatpush.msra.mxu0 0.0
    %286 = vmatpush.msra.mxu0 0.0
    %287 = vmatpush.msra.mxu0 0.0
    %288 = vmatpush.msra.mxu0 0.0
    %289 = vmatpush.msra.mxu0 0.0
    %290 = vmatpush.msra.mxu0 0.0
    %291 = vmatpush.msra.mxu0 0.0
    %292 = vmatpush.msra.mxu0 0.0
    %293 = vmatpush.msra.mxu0 0.0
    %294 = vmatpush.msra.mxu0 %v135
    %295 = vmatpush.msra.mxu0 %v131
    %296 = vmatpush.msra.mxu0 %v127
    %297 = vmatpush.msra.mxu0 %v123
    %298 = vmatmul.f32.gmra.mxu0 %v280
    %v299 = vpop.f32.mrf.mxu0
    %v300 = vadd.f32 %v271, %v299
    %301 = vdwg.mxu0
    %302 = vmatpush.msra.mxu0 0.0
    %303 = vmatpush.msra.mxu0 0.0
    %304 = vmatpush.msra.mxu0 0.0
    %305 = vmatpush.msra.mxu0 0.0
    %306 = vmatpush.msra.mxu0 0.0
    %307 = vmatpush.msra.mxu0 0.0
    %308 = vmatpush.msra.mxu0 0.0
    %309 = vmatpush.msra.mxu0 0.0
    %310 = vmatpush.msra.mxu0 0.0
    %311 = vmatpush.msra.mxu0 0.0
    %312 = vmatpush.msra.mxu0 0.0
    %313 = vmatpush.msra.mxu0 0.0
    %314 = vmatpush.msra.mxu0 %v136
    %315 = vmatpush.msra.mxu0 %v132
    %316 = vmatpush.msra.mxu0 %v128
    %317 = vmatpush.msra.mxu0 %v124
    %318 = vmatmul.f32.gmra.mxu0 %v280
    %v319 = vpop.f32.mrf.mxu0
    %v320 = vadd.f32 %v272, %v319
    %321 = vdwg.mxu0
    %322 = vmatpush.msra.mxu0 0.0
    %323 = vmatpush.msra.mxu0 0.0
    %324 = vmatpush.msra.mxu0 0.0
    %325 = vmatpush.msra.mxu0 0.0
    %326 = vmatpush.msra.mxu0 0.0
    %327 = vmatpush.msra.mxu0 0.0
    %328 = vmatpush.msra.mxu0 0.0
    %329 = vmatpush.msra.mxu0 0.0
    %330 = vmatpush.msra.mxu0 0.0
    %331 = vmatpush.msra.mxu0 0.0
    %332 = vmatpush.msra.mxu0 0.0
    %333 = vmatpush.msra.mxu0 0.0
    %334 = vmatpush.msra.mxu0 %v137
    %335 = vmatpush.msra.mxu0 %v133
    %336 = vmatpush.msra.mxu0 %v129
    %337 = vmatpush.msra.mxu0 %v125
    %338 = vmatmul.f32.gmra.mxu0 %v280
    %v339 = vpop.f32.mrf.mxu0
    %v340 = vadd.f32 %v273, %v339
    %341 = vdwg.mxu0
    %342 = vmatpush.msra.mxu0 0.0
    %343 = vmatpush.msra.mxu0 0.0
    %344 = vmatpush.msra.mxu0 0.0
    %345 = vmatpush.msra.mxu0 0.0
    %346 = vmatpush.msra.mxu0 0.0
    %347 = vmatpush.msra.mxu0 0.0
    %348 = vmatpush.msra.mxu0 0.0
    %349 = vmatpush.msra.mxu0 0.0
    %350 = vmatpush.msra.mxu0 0.0
    %351 = vmatpush.msra.mxu0 0.0
    %352 = vmatpush.msra.mxu0 0.0
    %353 = vmatpush.msra.mxu0 0.0
    %354 = vmatpush.msra.mxu0 %v138
    %355 = vmatpush.msra.mxu0 %v134
    %356 = vmatpush.msra.mxu0 %v130
    %357 = vmatpush.msra.mxu0 %v126
    %358 = vmatmul.f32.gmra.mxu0 %v280
    %v359 = vpop.f32.mrf.mxu0
    %v360 = vadd.f32 %v274, %v359
    %361 = vdwg.mxu0
    %v362 = vmul.f32 %v207, %v300
    %v363 = vadd.f32 %v362, %v320
    %vm364 = vcmp.gt.f32.partialorder %v363, 0.0
    %v365 = vmul.f32 %v363, 0.01
    %v366 = vsel %vm364, %v363, %v365
    %367 = vmatpush.msra.mxu0 %v106
    %368 = vmatpush.msra.mxu0 %v105
    %369 = vmatpush.msra.mxu0 %v104
    %370 = vmatpush.msra.mxu0 %v103
    %371 = vmatpush.msra.mxu0 %v102
    %372 = vmatpush.msra.mxu0 %v101
    %373 = vmatpush.msra.mxu0 %v100
    %374 = vmatpush.msra.mxu0 %v99
    %375 = vmatpush.msra.mxu0 %v98
    %376 = vmatpush.msra.mxu0 %v97
    %377 = vmatpush.msra.mxu0 %v96
    %378 = vmatpush.msra.mxu0 %v95
    %379 = vmatpush.msra.mxu0 %v94
    %380 = vmatpush.msra.mxu0 %v93
    %381 = vmatpush.msra.mxu0 %v92
    %382 = vmatpush.msra.mxu0 %v91
    %383 = vmatmul.f32.gmra.mxu0 %v366
    %v384 = vpop.f32.mrf.mxu0
    %v385 = vadd.f32 %v144, %v384
    %386 = vdwg.mxu0
    %vm387 = vcmp.gt.f32.partialorder %v385, 0.0
    %v388 = vmul.f32 %v385, 0.01
    %v389 = vsel %vm387, %v385, %v388
    %390 = vmatpush.msra.mxu0 %v122
    %391 = vmatpush.msra.mxu0 %v121
    %392 = vmatpush.msra.mxu0 %v120
    %393 = vmatpush.msra.mxu0 %v119
    %394 = vmatpush.msra.mxu0 %v118
    %395 = vmatpush.msra.mxu0 %v117
    %396 = vmatpush.msra.mxu0 %v116
    %397 = vmatpush.msra.mxu0 %v115
    %398 = vmatpush.msra.mxu0 %v114
    %399 = vmatpush.msra.mxu0 %v113
    %400 = vmatpush.msra.mxu0 %v112
    %401 = vmatpush.msra.mxu0 %v111
    %402 = vmatpush.msra.mxu0 %v110
    %403 = vmatpush.msra.mxu0 %v109
    %404 = vmatpush.msra.mxu0 %v108
    %405 = vmatpush.msra.mxu0 %v107
    %406 = vmatmul.f32.gmra.mxu0 %v389
    %v407 = vpop.f32.mrf.mxu0
    %v408 = vadd.f32 %v145, %v407
    %409 = vdwg.mxu0
    %vm410 = vcmp.gt.f32.partialorder %v408, 0.0
    %v411 = vmul.f32 %v408, 0.01
    %v412 = vsel %vm410, %v408, %v411
    %v413 = vmul.f32 %v412, %v340
    %v414 = vadd.f32 %v413, %v360
    %v415 = vsel %vm180, %v414, 0.0
    %416 = vadd.xlane.f32.xlu0 %v415
    %v417 = vpop.xlane.xlu0 %416
    %vm418 = vcmask 3072
    %419 = vst.msk [vmem:[%s5] sm:$0xf] %vm418, %v417
    // Predicated region
    $region34: #{tpu_custom_call.1} parent=1 // pred_check
      _
    $region35: #{tpu_custom_call.1} parent=1 // pred_check_branch
      %421 = sbr.rel (0) target = $region37
    $region36: #{tpu_custom_call.1} parent=1 // pred_region
      _
    $region37: #{tpu_custom_call.1} parent=1 // pred_fallthru
      _
    // Predicated region
    $region38: #{tpu_custom_call.1} parent=1 // pred_check
      _
    $region39: #{tpu_custom_call.1} parent=1 // pred_check_branch
      %423 = sbr.rel (0) target = $region41
    $region40: #{tpu_custom_call.1} parent=1 // pred_region
      _
    $region41: #{tpu_custom_call.1} parent=1 // pred_fallthru
      _
    %424 = vsyncpa [#allocation3], 1
    %425 = vsyncpa [#allocation5], 1

</llo_original>
